<compile_context>
chip_gen: v5e
topology: v5e:2x2
jax: 0.10.0
libtpu: 0.0.40
codegen_flags: <defaults>
</compile_context>

<pallas_src>
import jax
import jax.numpy as jnp
from jax.experimental import pallas as pl
from jax.experimental.pallas import tpu as pltpu

_MAX_TILE_ROWS = 2048                 # 1024-2048 rows ~= 86% of HBM copy roofline
_SMALL_BYTES = 2 * 1024 * 1024        # below this: single full-array block, grid=()
_VMEM_LIMIT_BYTES = 32 * 1024 * 1024  # scoped-VMEM ceiling safe on v5e/v6e/v7x
_TILE_VMEM_BUDGET = 16 * 1024 * 1024  # in+out x 2 buffers must stay under this


def _identity_kernel(z_ref, o_ref):
    # Stub Generator.forward defines no compute; forward the latent unchanged.
    o_ref[...] = z_ref[...]
    # TODO(synk): when a real generator network exists, replace this with a
    # K-reduction matmul (bf16 inputs, f32 VMEM accumulator, pl.when
    # init/finalize, >=256-wide N/K tiles on v6e/v7x, 128-multiples on v5e).


def _sublane_multiple(dtype) -> int:
    """Minimum second-to-last-dim tile multiple for the dtype's packing."""
    return {4: 8, 2: 16, 1: 32}.get(jnp.dtype(dtype).itemsize, 8)


def generator_forward(z: jax.Array) -> jax.Array:
    """Pallas wrapper mirroring Generator.forward(z) (a stub in the reference).

    z: (batch, latent_dim).  Returns z unchanged via a Pallas kernel.
    """
    if z.ndim != 2:
        raise ValueError(f"expected z of shape (batch, latent), got {z.shape}")
    batch, latent = z.shape

    # Degenerate input: nothing to copy — avoid an empty grid entirely.
    if batch == 0 or latent == 0:
        return z

    itemsize = jnp.dtype(z.dtype).itemsize
    nbytes = batch * latent * itemsize

    # ---- small path (GAN-typical latents): one full-array block, no grid ----
    # Full-array blocks are exempt from the (8,128) divisibility rule, and all
    # per-step grid overhead / padding disappears.
    if nbytes <= _SMALL_BYTES:
        return pl.pallas_call(
            _identity_kernel,
            out_shape=jax.ShapeDtypeStruct(z.shape, z.dtype),
        )(z)

    # ---- large path: tile the batch axis of the original array directly ----
    sub = _sublane_multiple(z.dtype)
    row_bytes = latent * itemsize
    # in + out specs, double-buffered => 4 resident tiles; keep under budget.
    max_rows_by_vmem = max(sub, _TILE_VMEM_BUDGET // (4 * row_bytes))
    tile_b = min(_MAX_TILE_ROWS, max_rows_by_vmem, pl.cdiv(batch, sub) * sub)
    tile_b = max(sub, (tile_b // sub) * sub)   # round down to sublane multiple
    grid_b = pl.cdiv(batch, tile_b)            # ragged tail handled by Pallas

    return pl.pallas_call(
        _identity_kernel,
        out_shape=jax.ShapeDtypeStruct(z.shape, z.dtype),
        grid_spec=pl.GridSpec(
            grid=(grid_b,),
            # Last block dim equals the full latent (lane-dense, no re-layout);
            # row tile is a sublane multiple for this dtype.
            in_specs=[pl.BlockSpec((tile_b, latent), lambda i: (i, 0))],
            out_specs=pl.BlockSpec((tile_b, latent), lambda i: (i, 0)),
        ),
        compiler_params=pltpu.CompilerParams(
            # Row tiles are independent. TODO(synk): on v7x (2 TCs) switch this
            # axis to pltpu.CORE_PARALLEL to shard the copy across both cores.
            dimension_semantics=("parallel",),
            vmem_limit_bytes=_VMEM_LIMIT_BYTES,
        ),
    )(z)


if __name__ == "__main__":
    key = jax.random.PRNGKey(0)
    # Small, GAN-typical latent input: batch=2, latent_dim=32.
    z = jax.random.normal(key, (2, 32), dtype=jnp.float32)

    out = jax.block_until_ready(generator_forward(z))

    # The stub forward defines no transformation; the kernel must return the
    # latent unchanged (exact identity -> array_equal, not allclose).
    assert out.shape == z.shape and out.dtype == z.dtype
    assert bool(jnp.array_equal(out, z)), "identity pass-through mismatch"

    print("KERNEL_OK")
</pallas_src>

<mosaic_0001>
module attributes {stable_mosaic.version = 11 : i64} {
  func.func @_identity_kernel(%arg0: memref<2x32xf32, #tpu.memory_space<vmem>>, %arg1: memref<2x32xf32, #tpu.memory_space<vmem>>) attributes {dimension_semantics = [], scalar_prefetch = 0 : i64, scratch_operands = 0 : i64, tpu.core_type = #tpu.core_type<tc>} {
    %c0 = arith.constant 0 : index
    %c0_0 = arith.constant 0 : index
    %0 = vector.load %arg0[%c0, %c0_0] : memref<2x32xf32, #tpu.memory_space<vmem>>, vector<2x32xf32>
    %c0_1 = arith.constant 0 : index
    %c0_2 = arith.constant 0 : index
    %1 = vector.load %arg1[%c0_1, %c0_2] : memref<2x32xf32, #tpu.memory_space<vmem>>, vector<2x32xf32>
    tpu.vector_store %arg1[%c0_1, %c0_2], %0 {strides = array<i32>} : memref<2x32xf32, #tpu.memory_space<vmem>>, vector<2x32xf32>,
    return
  }
}

</mosaic_0001>

<llo_original>
// kernel: tpu_custom_call.1
$region0: #{tpu_custom_call.1}
  #allocation0 [shape = 'u32[]', space=smem, size = 0x4, offset = 0x4, fixed_abs, tag = 'smem constant byte address 0x4 - core index']
  #allocation1 [shape = 'u32[72,128]{1,0:T(1,128)}', space=vmem, size = 0x9000, scoped, tag = 'internal scratch']
  %s0 = inlined_call_operand.hbm [shape: f32[2,32], index: 0, kind: input, shape index: {}]
  %s1 = inlined_call_operand.hbm [shape: f32[2,32], index: 1, kind: output, shape index: {}]
  %s2 = sld [smem:[#allocation0]]
  $region18: #{tpu_custom_call.1} parent=0
    _
  %s4 = ssub.s32 1, %s2
  %s5 = scalar_select 0, %s4, %s2
  $region1: #{tpu_custom_call.1} parent=0
    #allocation2 [shape = 'u8[1024]{0}', space=vmem, size = 0x400, scoped, tag = 'input window, operand 0, single buffered']
    #allocation3 [shape = 's32[1]{0}', space=sflag, size = 0x4, scoped, tag = 'scoped memory for tpu_custom_call.1']
    #allocation4 [shape = 's32[1]{0}', space=sflag, size = 0x4, scoped, tag = 'scoped memory for tpu_custom_call.1']
    #allocation5 [shape = 'u8[1024]{0}', space=vmem, size = 0x400, scoped, tag = 'output window, operand 0, single buffered']
    %6 = vsyncpa [#allocation3], 0
    %7 = vsyncpa [#allocation4], 0
    // Predicated region
    $region2: #{tpu_custom_call.1} parent=1 // pred_check
      _
    $region3: #{tpu_custom_call.1} parent=1 // pred_check_branch
      %9 = sbr.rel (0) target = $region5
    $region4: #{tpu_custom_call.1} parent=1 // pred_region
      %11 = vsyncadd [#allocation3], 0
      %s13 = sshll.u32 %s0, 4
      %s14 = int_to_ptr.hbm [resolvable:$true] %s13
      %s15 = sshll.u32 [#allocation2], 4
      %s16 = int_to_ptr.vmem [resolvable:$true] %s15
      %18 = dma.hbm_to_vmem [thread:$0]  %s14, 32, %s16, [#allocation3]
    $region5: #{tpu_custom_call.1} parent=1 // pred_fallthru
      _
    // Predicated region
    $region6: #{tpu_custom_call.1} parent=1 // pred_check
      _
    $region7: #{tpu_custom_call.1} parent=1 // pred_check_branch
      %20 = sbr.rel (0) target = $region9
    $region8: #{tpu_custom_call.1} parent=1 // pred_region
      %22 = dma.done [#allocation3], 32
    $region9: #{tpu_custom_call.1} parent=1 // pred_fallthru
      _
    %v23 = vld [vmem:[#allocation2] sm:$0x3]
    %vm24 = vcmask 254976
    %25 = vst.msk [vmem:[#allocation5] sm:$0x3] %vm24, %v23
    // Predicated region
    $region10: #{tpu_custom_call.1} parent=1 // pred_check
      _
    $region11: #{tpu_custom_call.1} parent=1 // pred_check_branch
      %27 = sbr.rel (0) target = $region13
    $region12: #{tpu_custom_call.1} parent=1 // pred_region
      %29 = vsyncadd [#allocation4], 0
      %s31 = sshll.u32 [#allocation5], 4
      %s32 = int_to_ptr.vmem [resolvable:$true] %s31
      %s33 = sshll.u32 %s1, 4
      %s34 = int_to_ptr.hbm [resolvable:$true] %s33
      %36 = dma.vmem_to_hbm [thread:$0]  %s32, 32, %s34, [#allocation4]
    $region13: #{tpu_custom_call.1} parent=1 // pred_fallthru
      _
    // Predicated region
    $region14: #{tpu_custom_call.1} parent=1 // pred_check
      _
    $region15: #{tpu_custom_call.1} parent=1 // pred_check_branch
      %38 = sbr.rel (0) target = $region17
    $region16: #{tpu_custom_call.1} parent=1 // pred_region
      %40 = dma.done [#allocation4], 32
    $region17: #{tpu_custom_call.1} parent=1 // pred_fallthru
      _
    %41 = vsyncpa [#allocation3], 1
    %42 = vsyncpa [#allocation4], 1

</llo_original>
